<compile_context>
chip_gen: v7x
topology: tpu7x:2x2x1
jax: 0.10.0
libtpu: 0.0.40
codegen_flags: <defaults>
</compile_context>

<pallas_src>
import functools

import jax
import jax.numpy as jnp
from jax import lax
from jax.experimental import pallas as pl
from jax.experimental.pallas import tpu as pltpu


def dense_layer_kernel(x_ref, scale_ref, shift_ref, w_ref, mask_ref, out_ref,
                       *, C, W):
    # x_ref:     (1, C_pad, H*W)    one batch element, channel-major (zero-padded channels)
    # scale_ref: (C_pad, 1)         folded BN scale = gamma / sqrt(var + eps)   (0 in pad rows)
    # shift_ref: (C_pad, 1)         folded BN shift = beta - mean * scale       (0 in pad rows)
    # w_ref:     (Cout, 9*C_pad)    conv weight, tap-major: [(ky, kx, ci)]      (0 in pad cols)
    # mask_ref:  (9*C_pad, H*W)     {0,1} zero-padding validity mask, per tap, channel-broadcast
    # out_ref:   (1, C+Cout, H*W)   identity channels followed by conv channels
    Cout = w_ref.shape[0]
    HW = x_ref.shape[2]

    x = x_ref[0]                                    # (C_pad, HW)

    # Folded BatchNorm + LeakyReLU(0.2): dense VPU ops on the padded block.
    y = x * scale_ref[...] + shift_ref[...]
    y = jnp.where(y > 0, y, 0.2 * y)

    # im2col patch (9*C_pad, HW): one XLU lane rotation per off-center tap,
    # implicit zero padding applied with a single precomputed-mask multiply.
    taps = []
    for ky in range(3):
        for kx in range(3):
            off = (ky - 1) * W + (kx - 1)           # t[:, p] = y[:, p + off] (wrapped)
            if off == 0:
                taps.append(y)
            else:
                taps.append(pltpu.roll(y, (-off) % HW, axis=1))
    patch = jnp.concatenate(taps, axis=0) * mask_ref[...]

    # Single K = 9*C_pad MXU matmul: (Cout, K) @ (K, HW) -> (Cout, HW), f32 acc.
    conv = jnp.dot(w_ref[...], patch, preferred_element_type=jnp.float32)

    # Fused channel concat via two direct stores (lane dimension stays 256-wide).
    out_ref[0, :C, :] = x[:C, :].astype(out_ref.dtype)
    out_ref[0, C:C + Cout, :] = conv.astype(out_ref.dtype)


def dense_layer_forward(x_nchw, gamma, beta, conv_w_oihw, eps=1e-5):
    """Forward pass of DenseLayer. x_nchw: (N, C, H, W)."""
    N, C, H, W = x_nchw.shape
    Cout = conv_w_oihw.shape[0]
    HW = H * W
    C_pad = max(8, ((C + 7) // 8) * 8)              # sublane-align the channel axis
    K = 9 * C_pad

    x = x_nchw.reshape(N, C, HW)                    # free reshape, no transpose

    # BatchNorm2d (training mode): batch statistics over (N, H, W), biased var.
    xf = x.astype(jnp.float32)
    mean = jnp.mean(xf, axis=(0, 2))
    var = jnp.mean(jnp.square(xf - mean[None, :, None]), axis=(0, 2))
    scale = gamma * lax.rsqrt(var + eps)            # (C,)
    shift = beta - mean * scale                     # (C,)

    # Zero-pad channels so every im2col tap lands on an 8-sublane boundary.
    x_p = jnp.zeros((N, C_pad, HW), x.dtype).at[:, :C, :].set(x)
    scale_p = jnp.zeros((C_pad, 1), jnp.float32).at[:C, 0].set(scale)
    shift_p = jnp.zeros((C_pad, 1), jnp.float32).at[:C, 0].set(shift)

    # (Cout, Cin, 3, 3) -> pad Cin -> (Cout, 3, 3, C_pad) -> (Cout, 9*C_pad),
    # matching the (ky, kx, ci) ordering of the in-kernel patch.
    w_p = jnp.zeros((Cout, C_pad, 3, 3), jnp.float32).at[:, :C].set(
        conv_w_oihw.astype(jnp.float32))
    w_mat = jnp.transpose(w_p, (0, 2, 3, 1)).reshape(Cout, K)

    # Precomputed zero-padding validity mask (batch-invariant, DMA'd once and
    # kept resident across grid steps), pre-broadcast over padded channels.
    pos = jnp.arange(HW, dtype=jnp.int32)
    row = pos // W
    col = pos % W
    mask_rows = []
    for ky in range(3):
        for kx in range(3):
            dy, dx = ky - 1, kx - 1
            valid = ((row + dy >= 0) & (row + dy < H) &
                     (col + dx >= 0) & (col + dx < W))
            mask_rows.append(valid.astype(jnp.float32))
    mask = jnp.stack(mask_rows, axis=0)                                  # (9, HW)
    mask_full = jnp.broadcast_to(mask[:, None, :], (9, C_pad, HW)).reshape(K, HW)

    kernel = functools.partial(dense_layer_kernel, C=C, W=W)

    cost = pl.CostEstimate(
        flops=2 * N * HW * K * Cout + 8 * N * C_pad * HW,
        transcendentals=0,
        bytes_accessed=4 * (N * C_pad * HW + Cout * K + K * HW
                            + N * (C + Cout) * HW + 2 * C_pad),
    )

    out = pl.pallas_call(
        kernel,
        out_shape=jax.ShapeDtypeStruct((N, C + Cout, HW), x.dtype),
        grid=(N,),
        in_specs=[
            pl.BlockSpec((1, C_pad, HW), lambda n: (n, 0, 0)),
            pl.BlockSpec((C_pad, 1), lambda n: (0, 0)),
            pl.BlockSpec((C_pad, 1), lambda n: (0, 0)),
            pl.BlockSpec((Cout, K), lambda n: (0, 0)),
            pl.BlockSpec((K, HW), lambda n: (0, 0)),
        ],
        out_specs=pl.BlockSpec((1, C + Cout, HW), lambda n: (n, 0, 0)),
        compiler_params=pltpu.CompilerParams(
            dimension_semantics=("parallel",)),
        cost_estimate=cost,
    )(x_p, scale_p, shift_p, w_mat, mask_full)

    return out.reshape(N, C + Cout, H, W)


def dense_layer_reference(x, gamma, beta, conv_w, eps=1e-5):
    """Pure-JAX reference (NCHW), matches the PyTorch module in training mode."""
    mean = jnp.mean(x, axis=(0, 2, 3), keepdims=True)
    var = jnp.mean((x - mean) ** 2, axis=(0, 2, 3), keepdims=True)
    y = (x - mean) / jnp.sqrt(var + eps) * gamma[None, :, None, None] \
        + beta[None, :, None, None]
    y = jnp.where(y > 0, y, 0.2 * y)
    conv = lax.conv_general_dilated(
        y, conv_w, window_strides=(1, 1), padding=((1, 1), (1, 1)),
        dimension_numbers=("NCHW", "OIHW", "NCHW"))
    return jnp.concatenate([x, conv], axis=1)


if __name__ == "__main__":
    # Shapes consistent with DenseLayer(in_channels=4, growth_rate=8).
    N, C, H, W = 2, 4, 16, 16
    growth_rate = 8

    key = jax.random.PRNGKey(0)
    kx, kg, kb, kw = jax.random.split(key, 4)
    x = jax.random.normal(kx, (N, C, H, W), dtype=jnp.float32)
    gamma = jax.random.normal(kg, (C,), dtype=jnp.float32) * 0.1 + 1.0
    beta = jax.random.normal(kb, (C,), dtype=jnp.float32) * 0.1
    conv_w = jax.random.normal(kw, (growth_rate, C, 3, 3), dtype=jnp.float32) * 0.1

    out = dense_layer_forward(x, gamma, beta, conv_w)
    out = jax.block_until_ready(out)

    ref = dense_layer_reference(x, gamma, beta, conv_w)
    assert out.shape == (N, C + growth_rate, H, W), out.shape
    assert jnp.allclose(out, ref, atol=1e-4, rtol=1e-4), "mismatch vs reference"

    print("KERNEL_OK")
</pallas_src>

<mosaic_0001>
module attributes {stable_mosaic.version = 11 : i64} {
  func.func @dense_layer_kernel(%arg0: i32, %arg1: memref<1x8x256xf32, #tpu.memory_space<vmem>>, %arg2: memref<8x1xf32, #tpu.memory_space<vmem>>, %arg3: memref<8x1xf32, #tpu.memory_space<vmem>>, %arg4: memref<8x72xf32, #tpu.memory_space<vmem>>, %arg5: memref<72x256xf32, #tpu.memory_space<vmem>>, %arg6: memref<1x12x256xf32, #tpu.memory_space<vmem>>) attributes {dimension_semantics = [#tpu.dimension_semantics<parallel>], iteration_bounds = array<i64: 2>, scalar_prefetch = 0 : i64, scratch_operands = 0 : i64, tpu.core_type = #tpu.core_type<tc>, window_params = [{transform_indices = @transform_0, window_bounds = array<i64: 1, 8, 256>}, {pipeline_mode = #tpu.pipeline_mode<synchronous>, transform_indices = @transform_1, window_bounds = array<i64: 8, 1>}, {pipeline_mode = #tpu.pipeline_mode<synchronous>, transform_indices = @transform_2, window_bounds = array<i64: 8, 1>}, {pipeline_mode = #tpu.pipeline_mode<synchronous>, transform_indices = @transform_3, window_bounds = array<i64: 8, 72>}, {pipeline_mode = #tpu.pipeline_mode<synchronous>, transform_indices = @transform_4, window_bounds = array<i64: 72, 256>}, {transform_indices = @transform_5, window_bounds = array<i64: 1, 12, 256>}]} {
    %c0 = arith.constant 0 : index
    %c0_0 = arith.constant 0 : index
    %c0_1 = arith.constant 0 : index
    %0 = vector.load %arg1[%c0, %c0_0, %c0_1] : memref<1x8x256xf32, #tpu.memory_space<vmem>>, vector<1x8x256xf32>
    %1 = vector.shape_cast %0 : vector<1x8x256xf32> to vector<8x256xf32>
    %c0_2 = arith.constant 0 : index
    %c0_3 = arith.constant 0 : index
    %2 = vector.load %arg2[%c0_2, %c0_3] : memref<8x1xf32, #tpu.memory_space<vmem>>, vector<8x1xf32>
    %3 = vector.broadcast %2 : vector<8x1xf32> to vector<8x256xf32>
    %4 = arith.mulf %1, %3 : vector<8x256xf32>
    %c0_4 = arith.constant 0 : index
    %c0_5 = arith.constant 0 : index
    %5 = vector.load %arg3[%c0_4, %c0_5] : memref<8x1xf32, #tpu.memory_space<vmem>>, vector<8x1xf32>
    %6 = vector.broadcast %5 : vector<8x1xf32> to vector<8x256xf32>
    %7 = arith.addf %4, %6 : vector<8x256xf32>
    %cst = arith.constant 0.000000e+00 : f32
    %8 = vector.broadcast %cst : f32 to vector<8x256xf32>
    %9 = arith.cmpf ogt, %7, %8 : vector<8x256xf32>
    %cst_6 = arith.constant 2.000000e-01 : f32
    %10 = vector.broadcast %cst_6 : f32 to vector<8x256xf32>
    %11 = arith.mulf %10, %7 : vector<8x256xf32>
    %12 = arith.select %9, %7, %11 : vector<8x256xi1>, vector<8x256xf32>
    %c17_i32 = arith.constant 17 : i32
    %13 = tpu.dynamic_rotate %12 by %c17_i32 dim 1 : vector<8x256xf32>, i32 -> vector<8x256xf32>
    %c16_i32 = arith.constant 16 : i32
    %14 = tpu.dynamic_rotate %12 by %c16_i32 dim 1 : vector<8x256xf32>, i32 -> vector<8x256xf32>
    %c15_i32 = arith.constant 15 : i32
    %15 = tpu.dynamic_rotate %12 by %c15_i32 dim 1 : vector<8x256xf32>, i32 -> vector<8x256xf32>
    %c1_i32 = arith.constant 1 : i32
    %16 = tpu.dynamic_rotate %12 by %c1_i32 dim 1 : vector<8x256xf32>, i32 -> vector<8x256xf32>
    %c255_i32 = arith.constant 255 : i32
    %17 = tpu.dynamic_rotate %12 by %c255_i32 dim 1 : vector<8x256xf32>, i32 -> vector<8x256xf32>
    %c241_i32 = arith.constant 241 : i32
    %18 = tpu.dynamic_rotate %12 by %c241_i32 dim 1 : vector<8x256xf32>, i32 -> vector<8x256xf32>
    %c240_i32 = arith.constant 240 : i32
    %19 = tpu.dynamic_rotate %12 by %c240_i32 dim 1 : vector<8x256xf32>, i32 -> vector<8x256xf32>
    %c239_i32 = arith.constant 239 : i32
    %20 = tpu.dynamic_rotate %12 by %c239_i32 dim 1 : vector<8x256xf32>, i32 -> vector<8x256xf32>
    %21 = tpu.concatenate %13, %14, %15, %16, %12, %17, %18, %19, %20 in 0 : vector<8x256xf32>, vector<8x256xf32>, vector<8x256xf32>, vector<8x256xf32>, vector<8x256xf32>, vector<8x256xf32>, vector<8x256xf32>, vector<8x256xf32>, vector<8x256xf32> -> vector<72x256xf32>
    %c0_7 = arith.constant 0 : index
    %c0_8 = arith.constant 0 : index
    %22 = vector.load %arg5[%c0_7, %c0_8] : memref<72x256xf32, #tpu.memory_space<vmem>>, vector<72x256xf32>
    %23 = arith.mulf %21, %22 : vector<72x256xf32>
    %c0_9 = arith.constant 0 : index
    %c0_10 = arith.constant 0 : index
    %24 = vector.load %arg4[%c0_9, %c0_10] : memref<8x72xf32, #tpu.memory_space<vmem>>, vector<8x72xf32>
    %cst_11 = arith.constant dense<0.000000e+00> : vector<8x256xf32>
    %25 = tpu.matmul %24, %23, %cst_11 {dimension_numbers = #tpu.dot_dimension_numbers<[1], [0], [0], [1], [0, 0, 1, 1], [], []>} : vector<8x72xf32>, vector<72x256xf32>, vector<8x256xf32> -> vector<8x256xf32>
    %26 = vector.extract_strided_slice %1 {offsets = [0, 0], sizes = [4, 256], strides = [1, 1]} : vector<8x256xf32> to vector<4x256xf32>
    %c0_12 = arith.constant 0 : index
    %c0_13 = arith.constant 0 : index
    %c0_14 = arith.constant 0 : index
    %27 = vector.load %arg6[%c0_12, %c0_13, %c0_14] : memref<1x12x256xf32, #tpu.memory_space<vmem>>, vector<1x4x256xf32>
    %28 = vector.shape_cast %27 : vector<1x4x256xf32> to vector<4x256xf32>
    %29 = vector.shape_cast %26 : vector<4x256xf32> to vector<1x4x256xf32>
    tpu.vector_store %arg6[%c0_12, %c0_13, %c0_14], %29 {strides = array<i32>} : memref<1x12x256xf32, #tpu.memory_space<vmem>>, vector<1x4x256xf32>,
    %c0_15 = arith.constant 0 : index
    %c4 = arith.constant 4 : index
    %c0_16 = arith.constant 0 : index
    %30 = vector.load %arg6[%c0_15, %c4, %c0_16] : memref<1x12x256xf32, #tpu.memory_space<vmem>>, vector<1x8x256xf32>
    %31 = vector.shape_cast %30 : vector<1x8x256xf32> to vector<8x256xf32>
    %32 = vector.shape_cast %25 : vector<8x256xf32> to vector<1x8x256xf32>
    tpu.vector_store %arg6[%c0_15, %c4, %c0_16], %32 {strides = array<i32>} : memref<1x12x256xf32, #tpu.memory_space<vmem>>, vector<1x8x256xf32>,
    return
  }
  func.func @transform_0(%arg0: i32) -> (i32, i32, i32) {
    %c0_i32 = arith.constant 0 : i32
    %c0_i32_0 = arith.constant 0 : i32
    %c0_i32_1 = arith.constant 0 : i32
    return %arg0, %c0_i32, %c0_i32_0 : i32, i32, i32
  }
  func.func @transform_1(%arg0: i32) -> (i32, i32) {
    %c0_i32 = arith.constant 0 : i32
    %c0_i32_0 = arith.constant 0 : i32
    %c0_i32_1 = arith.constant 0 : i32
    return %c0_i32, %c0_i32_0 : i32, i32
  }
  func.func @transform_2(%arg0: i32) -> (i32, i32) {
    %c0_i32 = arith.constant 0 : i32
    %c0_i32_0 = arith.constant 0 : i32
    %c0_i32_1 = arith.constant 0 : i32
    return %c0_i32, %c0_i32_0 : i32, i32
  }
  func.func @transform_3(%arg0: i32) -> (i32, i32) {
    %c0_i32 = arith.constant 0 : i32
    %c0_i32_0 = arith.constant 0 : i32
    %c0_i32_1 = arith.constant 0 : i32
    return %c0_i32, %c0_i32_0 : i32, i32
  }
  func.func @transform_4(%arg0: i32) -> (i32, i32) {
    %c0_i32 = arith.constant 0 : i32
    %c0_i32_0 = arith.constant 0 : i32
    %c0_i32_1 = arith.constant 0 : i32
    return %c0_i32, %c0_i32_0 : i32, i32
  }
  func.func @transform_5(%arg0: i32) -> (i32, i32, i32) {
    %c0_i32 = arith.constant 0 : i32
    %c0_i32_0 = arith.constant 0 : i32
    %c0_i32_1 = arith.constant 0 : i32
    return %arg0, %c0_i32, %c0_i32_0 : i32, i32, i32
  }
}

</mosaic_0001>

<llo_original>
// kernel: tpu_custom_call.1
$region0: #{tpu_custom_call.1}
  #allocation0 [shape = 'u32[]', space=smem, size = 0x4, offset = 0x4, fixed_abs, tag = 'smem constant byte address 0x4 - core index']
  #allocation1 [shape = 'u32[144,128]{1,0:T(1,128)}', space=vmem, size = 0x12000, scoped, tag = 'internal scratch']
  %s0 = inlined_call_operand.hbm [shape: f32[2,8,256], index: 0, kind: input, shape index: {}]
  %s1 = inlined_call_operand.vmem [shape: f32[8,1], index: 1, kind: input, shape index: {}]
  %s2 = inlined_call_operand.vmem [shape: f32[8,1], index: 2, kind: input, shape index: {}]
  %s3 = inlined_call_operand.vmem [shape: f32[8,72], index: 3, kind: input, shape index: {}]
  %s4 = inlined_call_operand.hbm [shape: f32[72,256], index: 4, kind: input, shape index: {}]
  %s5 = inlined_call_operand.vmem [shape: f32[2,12,256], index: 5, kind: output, shape index: {}]
  %s6 = sld [smem:[#allocation0]]
  $region61: #{tpu_custom_call.1} parent=0
    _
  %s8 = ssub.s32 1, %s6
  %s9 = scalar_select 0, %s8, %s6
  $region1: #{tpu_custom_call.1} parent=0
    #allocation2 [shape = 'u8[16384]{0}', space=vmem, size = 0x4000, scoped, tag = 'input window, operand 0']
    #allocation3 [shape = 's32[2]{0}', space=sflag, size = 0x8, scoped, tag = 'scoped memory for tpu_custom_call.1']
    #allocation4 [shape = 'u8[73728]{0}', space=vmem, size = 0x12000, scoped, tag = 'input window, operand 4, single buffered']
    #allocation5 [shape = 's32[1]{0}', space=sflag, size = 0x4, scoped, tag = 'scoped memory for tpu_custom_call.1']
    %10 = vsyncpa [#allocation3], 0
    %s11 = scalar_lea.sflag [#allocation3], 1
    %12 = vsyncpa %s11, 0
    %13 = vsyncpa [#allocation5], 0
    loop: start=0, step=1, limit=4
    $region2: #{tpu_custom_call.1} parent=1 // loop_pre_header
      _
    $region3: #{tpu_custom_call.1} parent=1 // loop_header
      %s15 = sphi 0, %s19
      %p16 = scmp.ge.s32.totalorder %s15, 4
      %s25 = sphi 0, %s27
      %s28 = sphi 0, %s25
      %s29 = sphi 0, %s28
      %s45 = sphi 0, %s29
      %s49 = sphi 0, %s49
      %s51 = sphi 0, %s49
      %s52 = sphi 0, %s51
      %s66 = sphi 0, %s52
      %s70 = sphi 0, %s70
      %s72 = sphi 0, %s70
      %s73 = sphi 0, %s72
      %s87 = sphi 0, %s73
      %s91 = sphi 0, %s91
      %s93 = sphi 0, %s91
      %s94 = sphi 0, %s93
      %s108 = sphi 0, %s94
      %s112 = sphi 0, %s112
      %s114 = sphi 0, %s112
      %s115 = sphi 0, %s114
      %s129 = sphi 0, %s115
      %s135 = sphi 0, %s137
      %s138 = sphi 0, %s135
      %s139 = sphi 0, %s138
      %s155 = sphi 0, %s139
    $region4: #{tpu_custom_call.1} parent=1 // loop_header_branch
      %18 = sbr.rel (%p16) target = $region8
    $region5: #{tpu_custom_call.1} parent=1 // loop_body
      %s20 = ssub.s32 %s15, 1
      %s21 = ssub.s32 %s15, 2
      %s22 = sadd.s32 %s15, 1
      %s23 = ssub.s32 %s15, %s22
      %p24 = scmp.eq.s32.totalorder %s23, 0
      %s26 = sadd.s32 %s25, 1
      %s27 = scalar_select %p24, %s25, %s26
      %p30 = pneg %p24
      %p31 = scmp.eq.s32.totalorder %s15, 1
      %p32 = por %p30, %p31
      %p33 = scmp.ne.s32.totalorder %s25, %s28
      %p34 = scmp.eq.s32.totalorder %s15, 0
      %p35 = por %p33, %p34
      %p36 = scmp.ne.s32.totalorder %s25, %s28
      %p37 = scmp.eq.s32.totalorder %s20, 1
      %p38 = por %p36, %p37
      %p39 = scmp.ne.s32.totalorder %s28, %s29
      %p40 = scmp.eq.s32.totalorder %s20, 0
      %p41 = por %p39, %p40
      %p42 = scmp.ne.s32.totalorder %s28, %s29
      %p43 = scmp.eq.s32.totalorder %s21, 1
      %p44 = por %p42, %p43
      %p46 = scmp.ne.s32.totalorder %s29, %s45
      %p47 = scmp.eq.s32.totalorder %s21, 0
      %p48 = por %p46, %p47
      %s50 = sadd.s32 %s49, 1
      %p53 = scmp.eq.s32.totalorder %s15, 1
      %p54 = scmp.ne.s32.totalorder %s49, %s51
      %p55 = scmp.eq.s32.totalorder %s15, 0
      %p56 = por %p54, %p55
      %p57 = scmp.ne.s32.totalorder %s49, %s51
      %p58 = scmp.eq.s32.totalorder %s20, 1
      %p59 = por %p57, %p58
      %p60 = scmp.ne.s32.totalorder %s51, %s52
      %p61 = scmp.eq.s32.totalorder %s20, 0
      %p62 = por %p60, %p61
      %p63 = scmp.ne.s32.totalorder %s51, %s52
      %p64 = scmp.eq.s32.totalorder %s21, 1
      %p65 = por %p63, %p64
      %p67 = scmp.ne.s32.totalorder %s52, %s66
      %p68 = scmp.eq.s32.totalorder %s21, 0
      %p69 = por %p67, %p68
      %s71 = sadd.s32 %s70, 1
      %p74 = scmp.eq.s32.totalorder %s15, 1
      %p75 = scmp.ne.s32.totalorder %s70, %s72
      %p76 = scmp.eq.s32.totalorder %s15, 0
      %p77 = por %p75, %p76
      %p78 = scmp.ne.s32.totalorder %s70, %s72
      %p79 = scmp.eq.s32.totalorder %s20, 1
      %p80 = por %p78, %p79
      %p81 = scmp.ne.s32.totalorder %s72, %s73
      %p82 = scmp.eq.s32.totalorder %s20, 0
      %p83 = por %p81, %p82
      %p84 = scmp.ne.s32.totalorder %s72, %s73
      %p85 = scmp.eq.s32.totalorder %s21, 1
      %p86 = por %p84, %p85
      %p88 = scmp.ne.s32.totalorder %s73, %s87
      %p89 = scmp.eq.s32.totalorder %s21, 0
      %p90 = por %p88, %p89
      %s92 = sadd.s32 %s91, 1
      %p95 = scmp.eq.s32.totalorder %s15, 1
      %p96 = scmp.ne.s32.totalorder %s91, %s93
      %p97 = scmp.eq.s32.totalorder %s15, 0
      %p98 = por %p96, %p97
      %p99 = scmp.ne.s32.totalorder %s91, %s93
      %p100 = scmp.eq.s32.totalorder %s20, 1
      %p101 = por %p99, %p100
      %p102 = scmp.ne.s32.totalorder %s93, %s94
      %p103 = scmp.eq.s32.totalorder %s20, 0
      %p104 = por %p102, %p103
      %p105 = scmp.ne.s32.totalorder %s93, %s94
      %p106 = scmp.eq.s32.totalorder %s21, 1
      %p107 = por %p105, %p106
      %p109 = scmp.ne.s32.totalorder %s94, %s108
      %p110 = scmp.eq.s32.totalorder %s21, 0
      %p111 = por %p109, %p110
      %s113 = sadd.s32 %s112, 1
      %p116 = scmp.eq.s32.totalorder %s15, 1
      %p117 = scmp.ne.s32.totalorder %s112, %s114
      %p118 = scmp.eq.s32.totalorder %s15, 0
      %p119 = por %p117, %p118
      %p120 = scmp.ne.s32.totalorder %s112, %s114
      %p121 = scmp.eq.s32.totalorder %s20, 1
      %p122 = por %p120, %p121
      %p123 = scmp.ne.s32.totalorder %s114, %s115
      %p124 = scmp.eq.s32.totalorder %s20, 0
      %p125 = por %p123, %p124
      %p126 = scmp.ne.s32.totalorder %s114, %s115
      %p127 = scmp.eq.s32.totalorder %s21, 1
      %p128 = por %p126, %p127
      %p130 = scmp.ne.s32.totalorder %s115, %s129
      %p131 = scmp.eq.s32.totalorder %s21, 0
      %p132 = por %p130, %p131
      %s133 = ssub.s32 %s15, %s22
      %p134 = scmp.eq.s32.totalorder %s133, 0
      %s136 = sadd.s32 %s135, 1
      %s137 = scalar_select %p134, %s135, %s136
      %p140 = pneg %p134
      %p141 = scmp.eq.s32.totalorder %s15, 1
      %p142 = por %p140, %p141
      %p143 = scmp.ne.s32.totalorder %s135, %s138
      %p144 = scmp.eq.s32.totalorder %s15, 0
      %p145 = por %p143, %p144
      %p146 = scmp.ne.s32.totalorder %s135, %s138
      %p147 = scmp.eq.s32.totalorder %s20, 1
      %p148 = por %p146, %p147
      %p149 = scmp.ne.s32.totalorder %s138, %s139
      %p150 = scmp.eq.s32.totalorder %s20, 0
      %p151 = por %p149, %p150
      %p152 = scmp.ne.s32.totalorder %s138, %s139
      %p153 = scmp.eq.s32.totalorder %s21, 1
      %p154 = por %p152, %p153
      %p156 = scmp.ne.s32.totalorder %s139, %s155
      %p157 = scmp.eq.s32.totalorder %s21, 0
      %p158 = por %p156, %p157
      %p159 = scmp.le.s32.totalorder 1, %s15
      %p160 = scmp.lt.s32.totalorder %s15, 3
      %p161 = pnand %p159, %p160
      %p162 = pneg %p161
      // Predicated region
      $region9: #{tpu_custom_call.1} parent=5 // pred_check
        _
      $region10: #{tpu_custom_call.1} parent=5 // pred_check_branch
        %164 = sbr.rel (%p161) target = $region12
      $region11: #{tpu_custom_call.1} parent=5 // pred_region
        %s165 = ssub.s32 %s15, 1
        // Predicated region
        $region13: #{tpu_custom_call.1} parent=11 // pred_check
          %p166 = pneg %p62
        $region14: #{tpu_custom_call.1} parent=11 // pred_check_branch
          %168 = sbr.rel (%p166) target = $region16
        $region15: #{tpu_custom_call.1} parent=11 // pred_region
          _
        $region16: #{tpu_custom_call.1} parent=11 // pred_fallthru
          _
        // Predicated region
        $region17: #{tpu_custom_call.1} parent=11 // pred_check
          %p169 = pneg %p83
        $region18: #{tpu_custom_call.1} parent=11 // pred_check_branch
          %171 = sbr.rel (%p169) target = $region20
        $region19: #{tpu_custom_call.1} parent=11 // pred_region
          _
        $region20: #{tpu_custom_call.1} parent=11 // pred_fallthru
          _
        // Predicated region
        $region21: #{tpu_custom_call.1} parent=11 // pred_check
          %p172 = pneg %p104
        $region22: #{tpu_custom_call.1} parent=11 // pred_check_branch
          %174 = sbr.rel (%p172) target = $region24
        $region23: #{tpu_custom_call.1} parent=11 // pred_region
          _
        $region24: #{tpu_custom_call.1} parent=11 // pred_fallthru
          _
        // Predicated region
        $region25: #{tpu_custom_call.1} parent=11 // pred_check
          %p175 = pneg %p125
        $region26: #{tpu_custom_call.1} parent=11 // pred_check_branch
          %177 = sbr.rel (%p175) target = $region28
        $region27: #{tpu_custom_call.1} parent=11 // pred_region
          %s179 = ssub.s32 2304, 2304
          %180 = vsyncadd [#allocation5], %s179
          %s181 = sshll.u32 [#allocation4], 4
          %s182 = int_to_ptr.vmem [resolvable:$true] %s181
          %187 = dma.hbm_to_vmem [thread:$0]  %s4, 2304, %s182, [#allocation5], 256, 256, 16
        $region28: #{tpu_custom_call.1} parent=11 // pred_fallthru
          _
      $region12: #{tpu_custom_call.1} parent=5 // pred_fallthru
        _
      %p188 = scmp.lt.s32.totalorder %s15, 2
      // Predicated region
      $region29: #{tpu_custom_call.1} parent=5 // pred_check
        %p189 = pneg %p188
      $region30: #{tpu_custom_call.1} parent=5 // pred_check_branch
        %191 = sbr.rel (%p189) target = $region32
      $region31: #{tpu_custom_call.1} parent=5 // pred_region
        // Predicated region
        $region33: #{tpu_custom_call.1} parent=31 // pred_check
          %p192 = pneg %p35
        $region34: #{tpu_custom_call.1} parent=31 // pred_check_branch
          %194 = sbr.rel (%p192) target = $region36
        $region35: #{tpu_custom_call.1} parent=31 // pred_region
          %s195 = sand.u32 %s25, 1
          %s196 = scalar_lea.sflag [#allocation3], %s195
          %s197 = sand.u32 %s25, 1
          %s198 = smul.addr %s197, 16
          %s199 = scalar_lea.vmem [#allocation2], %s198
          %s201 = ssub.s32 256, 256
          %202 = vsyncadd %s196, %s201
          %s203 = smul.addr %s15, 2
          %s204 = smul.addr %s203, 128
          %s205 = scalar_lea.hbm %s0, %s204
          %s207 = sshll.u32 %s199, 4
          %s208 = int_to_ptr.vmem [resolvable:$true] %s207
          %210 = dma.hbm_to_vmem [thread:$0]  %s205, 256, %s208, %s196
        $region36: #{tpu_custom_call.1} parent=31 // pred_fallthru
          _
      $region32: #{tpu_custom_call.1} parent=5 // pred_fallthru
        _
      %p211 = scmp.le.s32.totalorder 1, %s15
      %p212 = scmp.lt.s32.totalorder %s15, 3
      %p213 = pnand %p211, %p212
      %p214 = pneg %p213
      // Predicated region
      $region37: #{tpu_custom_call.1} parent=5 // pred_check
        _
      $region38: #{tpu_custom_call.1} parent=5 // pred_check_branch
        %216 = sbr.rel (%p213) target = $region40
      $region39: #{tpu_custom_call.1} parent=5 // pred_region
        %s217 = ssub.s32 %s15, 1
        %s218 = sand.u32 %s28, 1
        %s219 = scalar_lea.sflag [#allocation3], %s218
        %s220 = sand.u32 %s28, 1
        %s221 = smul.addr %s220, 16
        %s222 = scalar_lea.vmem [#allocation2], %s221
        // Predicated region
        $region41: #{tpu_custom_call.1} parent=39 // pred_check
          %p223 = pneg %p41
        $region42: #{tpu_custom_call.1} parent=39 // pred_check_branch
          %225 = sbr.rel (%p223) target = $region44
        $region43: #{tpu_custom_call.1} parent=39 // pred_region
          %226 = dma.done %s219, 256
        $region44: #{tpu_custom_call.1} parent=39 // pred_fallthru
          _
        // Predicated region
        $region45: #{tpu_custom_call.1} parent=39 // pred_check
          %p227 = pneg %p125
        $region46: #{tpu_custom_call.1} parent=39 // pred_check_branch
          %229 = sbr.rel (%p227) target = $region48
        $region47: #{tpu_custom_call.1} parent=39 // pred_region
          %230 = dma.done [#allocation5], 2304
        $region48: #{tpu_custom_call.1} parent=39 // pred_fallthru
          _
        %s231 = sand.u32 %s28, 1
        %s232 = scalar_lea.sflag [#allocation3], %s231
        %s233 = sand.u32 %s28, 1
        %s234 = smul.addr %s233, 16
        %s235 = scalar_lea.vmem [#allocation2], %s234
        %p236 = pneg %p41
        %p237 = pneg %p38
        %p238 = pneg %p62
        %p239 = pneg %p59
        %p240 = pneg %p83
        %p241 = pneg %p80
        %p242 = pneg %p104
        %p243 = pneg %p101
        %p244 = pneg %p125
        %p245 = pneg %p122
        %p246 = pneg %p151
        %p247 = pneg %p148
        %p248 = scmp.lt.s32.totalorder %s20, 1
        %s249 = scalar_select %p248, %s20, 1
        %s250 = smul.addr %s249, 4
        %s251 = smul.addr %s250, 8
        %s252 = scalar_lea.vmem %s5, %s251
        %p253 = scmp.lt.s32.totalorder %s20, 1
        %s254 = scalar_select %p253, %s20, 1
        %s255 = smul.addr %s254, 4
        %s256 = smul.addr %s255, 8
        %s257 = scalar_lea.vmem %s5, %s256
        %v258 = vld [vmem:[%s222] sm:$0xff]
        %v259 = vld [vmem:[%s222 + $0x8] sm:$0xff]
        %v260 = vld [vmem:[%s1] sm:$0xff]
        %262 = vset.pattern.permute.xlu0 0
        %263 = vperm.xlu0 %262, %v260
        %v264 = vpop.permute.xlu0 %263
        %v266 = vmul.f32 %v258, %v264
        %v267 = vmul.f32 %v259, %v264
        %v268 = vld [vmem:[%s2] sm:$0xff]
        %270 = vset.pattern.permute.xlu0 0
        %271 = vperm.xlu0 %270, %v268
        %v272 = vpop.permute.xlu0 %271
        %v274 = vadd.f32 %v266, %v272
        %v275 = vadd.f32 %v267, %v272
        %vm276 = vcmp.gt.f32.partialorder %v274, 0.0
        %vm277 = vcmp.gt.f32.partialorder %v275, 0.0
        %v278 = vmul.f32 %v274, 0.2
        %v279 = vmul.f32 %v275, 0.2
        %v280 = vsel %vm276, %v274, %v278
        %v281 = vsel %vm277, %v275, %v279
        %282 = vrot.lane.b32.xlu0 %v280, 17
        %v283 = vpop.permute.xlu0 %282
        %284 = vrot.lane.b32.xlu0 %v281, 17
        %v285 = vpop.permute.xlu0 %284
        %v286 = vlaneseq
        %v287 = vand.u32 %v286, 127
        %vm288 = vcmp.lt.s32.totalorder %v287, 17
        %v289 = vsel %vm288, %v283, %v285
        %v290 = vsel %vm288, %v285, %v283
        %291 = vrot.lane.b32.xlu0 %v280, 16
        %v292 = vpop.permute.xlu0 %291
        %293 = vrot.lane.b32.xlu0 %v281, 16
        %v294 = vpop.permute.xlu0 %293
        %vm295 = vcmp.lt.s32.totalorder %v287, 16
        %v296 = vsel %vm295, %v292, %v294
        %v297 = vsel %vm295, %v294, %v292
        %298 = vrot.lane.b32.xlu0 %v280, 15
        %v299 = vpop.permute.xlu0 %298
        %300 = vrot.lane.b32.xlu0 %v281, 15
        %v301 = vpop.permute.xlu0 %300
        %vm302 = vcmp.lt.s32.totalorder %v287, 15
        %v303 = vsel %vm302, %v299, %v301
        %v304 = vsel %vm302, %v301, %v299
        %305 = vrot.lane.b32.xlu0 %v280, 1
        %v306 = vpop.permute.xlu0 %305
        %307 = vrot.lane.b32.xlu0 %v281, 1
        %v308 = vpop.permute.xlu0 %307
        %vm309 = vcmp.lt.s32.totalorder %v287, 1
        %v310 = vsel %vm309, %v306, %v308
        %v311 = vsel %vm309, %v308, %v306
        %312 = vrot.lane.b32.xlu0 %v280, 127
        %v313 = vpop.permute.xlu0 %312
        %314 = vrot.lane.b32.xlu0 %v281, 127
        %v315 = vpop.permute.xlu0 %314
        %vm316 = vcmp.lt.s32.totalorder %v287, 127
        %v317 = vsel %vm316, %v313, %v315
        %v318 = vsel %vm316, %v315, %v313
        %319 = vrot.lane.b32.xlu0 %v280, 113
        %v320 = vpop.permute.xlu0 %319
        %321 = vrot.lane.b32.xlu0 %v281, 113
        %v322 = vpop.permute.xlu0 %321
        %vm323 = vcmp.lt.s32.totalorder %v287, 113
        %v324 = vsel %vm323, %v320, %v322
        %v325 = vsel %vm323, %v322, %v320
        %326 = vrot.lane.b32.xlu0 %v280, 112
        %v327 = vpop.permute.xlu0 %326
        %328 = vrot.lane.b32.xlu0 %v281, 112
        %v329 = vpop.permute.xlu0 %328
        %vm330 = vcmp.lt.s32.totalorder %v287, 112
        %v331 = vsel %vm330, %v327, %v329
        %v332 = vsel %vm330, %v329, %v327
        %333 = vrot.lane.b32.xlu0 %v280, 111
        %v334 = vpop.permute.xlu0 %333
        %335 = vrot.lane.b32.xlu0 %v281, 111
        %v336 = vpop.permute.xlu0 %335
        %vm337 = vcmp.lt.s32.totalorder %v287, 111
        %v338 = vsel %vm337, %v334, %v336
        %v339 = vsel %vm337, %v336, %v334
        %v340 = vld [vmem:[#allocation4] sm:$0xff]
        %v341 = vld [vmem:[#allocation4 + $0x8] sm:$0xff]
        %v342 = vld [vmem:[#allocation4 + $0x10] sm:$0xff]
        %v343 = vld [vmem:[#allocation4 + $0x18] sm:$0xff]
        %v344 = vld [vmem:[#allocation4 + $0x20] sm:$0xff]
        %v345 = vld [vmem:[#allocation4 + $0x28] sm:$0xff]
        %v346 = vld [vmem:[#allocation4 + $0x30] sm:$0xff]
        %v347 = vld [vmem:[#allocation4 + $0x38] sm:$0xff]
        %v348 = vld [vmem:[#allocation4 + $0x40] sm:$0xff]
        %v349 = vld [vmem:[#allocation4 + $0x48] sm:$0xff]
        %v350 = vld [vmem:[#allocation4 + $0x50] sm:$0xff]
        %v351 = vld [vmem:[#allocation4 + $0x58] sm:$0xff]
        %v352 = vld [vmem:[#allocation4 + $0x60] sm:$0xff]
        %v353 = vld [vmem:[#allocation4 + $0x68] sm:$0xff]
        %v354 = vld [vmem:[#allocation4 + $0x70] sm:$0xff]
        %v355 = vld [vmem:[#allocation4 + $0x78] sm:$0xff]
        %v356 = vld [vmem:[#allocation4 + $0x80] sm:$0xff]
        %v357 = vld [vmem:[#allocation4 + $0x88] sm:$0xff]
        %v358 = vmul.f32 %v290, %v340
        %v359 = vmul.f32 %v289, %v341
        %v360 = vmul.f32 %v297, %v342
        %v361 = vmul.f32 %v296, %v343
        %v362 = vmul.f32 %v304, %v344
        %v363 = vmul.f32 %v303, %v345
        %v364 = vmul.f32 %v311, %v346
        %v365 = vmul.f32 %v310, %v347
        %v366 = vmul.f32 %v280, %v348
        %v367 = vmul.f32 %v281, %v349
        %v368 = vmul.f32 %v317, %v350
        %v369 = vmul.f32 %v318, %v351
        %v370 = vmul.f32 %v324, %v352
        %v371 = vmul.f32 %v325, %v353
        %v372 = vmul.f32 %v331, %v354
        %v373 = vmul.f32 %v332, %v355
        %v374 = vmul.f32 %v338, %v356
        %v375 = vmul.f32 %v339, %v357
        %v376 = vld [vmem:[%s3] sm:$0xff]
        %vm377 = vcmask 588800
        %v379 = vsel %vm377, %v376, 0
        %381 = vmatprep.subr.mxu0 %v359
        %382 = vmatpush1.msra.mxu0 %v358
        %383 = vmatprep.subr.mxu0 %v361
        %384 = vmatpush1.msra.mxu0 %v360
        %385 = vmatprep.subr.mxu0 %v363
        %386 = vmatpush1.msra.mxu0 %v362
        %387 = vmatprep.subr.mxu0 %v365
        %388 = vmatpush1.msra.mxu0 %v364
        %389 = vmatprep.subr.mxu0 %v367
        %390 = vmatpush1.msra.mxu0 %v366
        %391 = vmatprep.subr.mxu0 %v369
        %392 = vmatpush1.msra.mxu0 %v368
        %393 = vmatprep.subr.mxu0 %v371
        %394 = vmatpush1.msra.mxu0 %v370
        %395 = vmatprep.subr.mxu0 %v373
        %396 = vmatpush1.msra.mxu0 %v372
        %397 = vmatprep.subr.mxu0 %v375
        %398 = vmatpush1.msra.mxu0 %v374
        %399 = vmatprep.subr.mxu0 0.0
        %400 = vmatpush1.msra.mxu0 0.0
        %401 = vmatprep.subr.mxu0 0.0
        %402 = vmatpush1.msra.mxu0 0.0
        %403 = vmatprep.subr.mxu0 0.0
        %404 = vmatpush1.msra.mxu0 0.0
        %405 = vmatprep.subr.mxu0 0.0
        %406 = vmatpush1.msra.mxu0 0.0
        %407 = vmatprep.subr.mxu0 0.0
        %408 = vmatpush1.msra.mxu0 0.0
        %409 = vmatprep.subr.mxu0 0.0
        %410 = vmatpush1.msra.mxu0 0.0
        %411 = vmatprep.subr.mxu0 0.0
        %412 = vmatpush1.msra.mxu0 0.0
        %413 = vmatprep.subr.mxu0 0.0
        %414 = vmatpush1.msra.mxu0 0.0
        %415 = vmatprep.subr.mxu0 0.0
        %416 = vmatpush1.msra.mxu0 0.0
        %417 = vmatprep.subr.mxu0 0.0
        %418 = vmatpush1.msra.mxu0 0.0
        %419 = vmatprep.subr.mxu0 0.0
        %420 = vmatpush1.msra.mxu0 0.0
        %421 = vmatprep.subr.mxu0 0.0
        %422 = vmatpush1.msra.mxu0 0.0
        %423 = vmatprep.subr.mxu0 0.0
        %424 = vmatpush1.msra.mxu0 0.0
        %425 = vmatprep.subr.mxu0 0.0
        %426 = vmatpush1.msra.mxu0 0.0
        %427 = vmatprep.subr.mxu0 0.0
        %428 = vmatpush1.msra.mxu0 0.0
        %429 = vmatprep.subr.mxu0 0.0
        %430 = vmatpush1.msra.mxu0 0.0
        %431 = vmatprep.subr.mxu0 0.0
        %432 = vmatpush1.msra.mxu0 0.0
        %433 = vmatprep.subr.mxu0 0.0
        %434 = vmatpush1.msra.mxu0 0.0
        %435 = vmatprep.subr.mxu0 0.0
        %436 = vmatpush1.msra.mxu0 0.0
        %437 = vmatprep.subr.mxu0 0.0
        %438 = vmatpush1.msra.mxu0 0.0
        %439 = vmatprep.subr.mxu0 0.0
        %440 = vmatpush1.msra.mxu0 0.0
        %441 = vmatprep.subr.mxu0 0.0
        %442 = vmatpush1.msra.mxu0 0.0
        %443 = vmatprep.subr.mxu0 0.0
        %444 = vmatpush1.msra.mxu0 0.0
        %445 = vmatprep.mubr.f32.mxu0 0.0
        %446 = vmatmul.mubr.f32.gmra.mrb[0].mxu0 %v379
        %v447 = vpop.f32.mrb[0].mxu0
        %v448 = vadd.f32 0.0, %v447
        %v449 = vpop.f32.mrb[0].mxu0
        %v450 = vadd.f32 0.0, %v449
        %451 = vdwg.mxu0
        %452 = vst [vmem:[%s257] sm:$0xf] %v258
        %453 = vst [vmem:[%s257 + $0x8] sm:$0xf] %v259
        %v456 = vrot.slane %v448, 4
        %v457 = vrot.slane %v450, 4
        %460 = vst [vmem:[%s257] sm:$0xf0] %v456
        %461 = vst [vmem:[%s257 + $0x8] sm:$0xf0] %v457
        %462 = vst [vmem:[%s257 + $0x10] sm:$0xf] %v456
        %463 = vst [vmem:[%s257 + $0x18] sm:$0xf] %v457
        %p464 = scmp.lt.s32.totalorder %s20, 1
        %s465 = scalar_select %p464, %s20, 1
        %s466 = smul.addr %s465, 4
        %s467 = smul.addr %s466, 8
        %s468 = scalar_lea.vmem %s5, %s467
        // Predicated region
        $region49: #{tpu_custom_call.1} parent=39 // pred_check
          %p469 = pneg %p148
        $region50: #{tpu_custom_call.1} parent=39 // pred_check_branch
          %471 = sbr.rel (%p469) target = $region52
        $region51: #{tpu_custom_call.1} parent=39 // pred_region
          _
        $region52: #{tpu_custom_call.1} parent=39 // pred_fallthru
          _
      $region40: #{tpu_custom_call.1} parent=5 // pred_fallthru
        _
      %p472 = scmp.le.s32.totalorder 2, %s15
      // Predicated region
      $region53: #{tpu_custom_call.1} parent=5 // pred_check
        %p473 = pneg %p472
      $region54: #{tpu_custom_call.1} parent=5 // pred_check_branch
        %475 = sbr.rel (%p473) target = $region56
      $region55: #{tpu_custom_call.1} parent=5 // pred_region
        %s476 = ssub.s32 %s15, 2
        // Predicated region
        $region57: #{tpu_custom_call.1} parent=55 // pred_check
          %p477 = pneg %p154
        $region58: #{tpu_custom_call.1} parent=55 // pred_check_branch
          %479 = sbr.rel (%p477) target = $region60
        $region59: #{tpu_custom_call.1} parent=55 // pred_region
          %p480 = scmp.lt.s32.totalorder %s21, 1
          %s481 = scalar_select %p480, %s21, 1
          %s482 = smul.addr %s481, 4
          %s483 = smul.addr %s482, 8
          %s484 = scalar_lea.vmem %s5, %s483
        $region60: #{tpu_custom_call.1} parent=55 // pred_fallthru
          _
      $region56: #{tpu_custom_call.1} parent=5 // pred_fallthru
        _
    $region6: #{tpu_custom_call.1} parent=1 // loop_footer
      %s19 = sadd.s32 1, %s15
    $region7: #{tpu_custom_call.1} parent=1 // loop_footer_branch
      %14 = sbr.rel target = $region3
    $region8: #{tpu_custom_call.1} parent=1 // loop_exit
      _
    %485 = vsyncpa [#allocation3], 1
    %s486 = scalar_lea.sflag [#allocation3], 1
    %487 = vsyncpa %s486, 1
    %488 = vsyncpa [#allocation5], 1

</llo_original>
